<compile_context>
chip_gen: v7x
topology: tpu7x:2x2x1
jax: 0.10.0
libtpu: 0.0.40
codegen_flags: <defaults>
</compile_context>

<pallas_src>
import jax
import jax.numpy as jnp
from jax.experimental import pallas as pl
from jax.experimental.pallas import tpu as pltpu

LANE = 128
SUBLANE = 8


def _round_up(x, m):
    return (x + m - 1) // m * m


def _nbytes(a):
    return a.size * a.dtype.itemsize


# ----------------------------------------------------------------------------- kernel
def value_model_kernel(
    belief_ref, state_ref,        # (block_b, belief_dim) f32, (block_b, state_dim) f32
    w1b_ref, w1s_ref, b1_ref,     # (belief_dim, H) f32, (state_dim, H) f32, (1, H) f32
    w2_ref, b2_ref,               # (H, H) compute dtype, (1, H) f32
    w3_ref, b3_ref,               # (H, H) compute dtype, (1, H) f32
    w4_ref,                       # (1, H) f32 (fc4 weight stored as a row)
    b4_ref,                       # (1, 1) f32 in SMEM
    out_ref,                      # (1, block_b) f32 lane-dense row
):
    cdt = w2_ref.dtype

    # fc1: two accumulating dots over the *un-concatenated* belief/state tiles
    # (saves the wrapper concat + its HBM round trip); f32 accumulation.
    h = jnp.dot(belief_ref[...], w1b_ref[...], preferred_element_type=jnp.float32)
    h = h + jnp.dot(state_ref[...], w1s_ref[...], preferred_element_type=jnp.float32)
    h = jnp.maximum(h + b1_ref[...], 0.0)

    # fc2 / fc3: MXU in the compute dtype (bf16 fast path), f32 accumulation;
    # bias add + ReLU stay f32 on the VPU (v5e VPU has no bf16).
    h = jnp.dot(h.astype(cdt), w2_ref[...], preferred_element_type=jnp.float32)
    h = jnp.maximum(h + b2_ref[...], 0.0)

    h = jnp.dot(h.astype(cdt), w3_ref[...], preferred_element_type=jnp.float32)
    h = jnp.maximum(h + b3_ref[...], 0.0)

    # fc4 (N=1): VPU multiply + XLU lane reduction; relayout the (block_b, 1)
    # per-row result to a lane-dense (1, block_b) row so the store is an
    # unmasked full-width vst instead of a 1-lane masked column.
    val = jnp.sum(h * w4_ref[...], axis=-1, keepdims=True) + b4_ref[0, 0]
    out_ref[...] = val.reshape(1, -1)


# ----------------------------------------------------------------------------- tiling
def _choose_block_b(B, block_b):
    """Pick the batch tile: as large as 1024 to amortize per-grid-step overhead,
    but keep the grid length >= 2 (128-aligned tiles) when the batch is big
    enough so dimension_semantics=("parallel",) can shard across v7x's 2 TCs.
    Multi-tile grids use lane multiples so the lane-dense output stays unmasked."""
    if block_b is None:
        if B > 1024:
            block_b = 1024
        elif B > 2 * LANE:
            block_b = _round_up((B + 1) // 2, LANE)   # two tiles -> both TCs busy
        else:
            block_b = _round_up(B, SUBLANE)           # single tile
    block_b = max(SUBLANE, _round_up(block_b, SUBLANE))
    B_pad = _round_up(B, block_b)
    if B_pad // block_b > 1 and block_b % LANE != 0:
        block_b = _round_up(block_b, LANE)
        B_pad = _round_up(B, block_b)
    return block_b, B_pad


# ----------------------------------------------------------------------------- wrapper
def value_model_forward(belief, state, packed, meta, *, block_b=None):
    """Returns value of shape (B,), matching torch's fc4(...).squeeze(dim=1)."""
    B, belief_dim = belief.shape
    state_dim = state.shape[1]
    hidden_pad = meta["hidden_pad"]

    block_b, B_pad = _choose_block_b(B, block_b)
    grid = (B_pad // block_b,)

    # belief / state go straight into the kernel: no concat / feature pad / cast
    # materialized in HBM.  Only the batch axis is padded, and only if needed.
    if B_pad != B:
        belief = jnp.pad(belief, ((0, B_pad - B), (0, 0)))
        state = jnp.pad(state, ((0, B_pad - B), (0, 0)))

    d_in = belief_dim + state_dim
    w_bytes = sum(_nbytes(packed[k]) for k in ("w1b", "w1s", "w2", "w3"))
    small_bytes = sum(_nbytes(packed[k]) for k in ("b1", "b2", "b3", "w4_row", "b4"))
    x_bytes = B_pad * d_in * belief.dtype.itemsize

    cost = pl.CostEstimate(
        flops=2 * B_pad * (d_in * hidden_pad + 2 * hidden_pad * hidden_pad + hidden_pad),
        transcendentals=0,
        bytes_accessed=x_bytes + w_bytes + small_bytes + B_pad * 4,
    )

    # VMEM budget: no extra 2x hedge (the estimate already double-buffers the
    # streamed tiles and counts weight buffers); cap at 48 MiB so a v7x TC
    # (64 MiB physical) keeps headroom for compiler-internal scratch.
    weight_bufs = 1 if hidden_pad >= 512 else 2       # Buffered(1) below when large
    vmem_need = (
        2 * block_b * d_in * belief.dtype.itemsize    # belief+state tiles, dbl-buffered
        + 2 * block_b * 4                             # lane-dense out tile, dbl-buffered
        + weight_bufs * (w_bytes + small_bytes)       # resident weights / biases
        + 4 * block_b * hidden_pad * 4                # f32 activations in flight
    )
    vmem_limit = int(min(max(vmem_need + (4 << 20), 8 << 20), 48 << 20))

    def res_spec(shape):
        # Grid-invariant (resident) operands: constant index map -> DMA'd once.
        # At larger hidden sizes single-buffer them to reclaim the second copy
        # under v7x's 64 MiB VMEM; neutral on v5e/v6e.
        if hidden_pad >= 512:
            return pl.BlockSpec(shape, lambda i: (0, 0), pipeline_mode=pl.Buffered(1))
        return pl.BlockSpec(shape, lambda i: (0, 0))

    out = pl.pallas_call(
        value_model_kernel,
        out_shape=jax.ShapeDtypeStruct((1, B_pad), jnp.float32),
        grid=grid,
        in_specs=[
            # Batch-tiled activations.  If the x-tile DMA is still exposed at
            # very large B, these two specs are the ones to bump to Buffered(3).
            pl.BlockSpec((block_b, belief_dim), lambda i: (i, 0)),
            pl.BlockSpec((block_b, state_dim), lambda i: (i, 0)),
            res_spec((belief_dim, hidden_pad)),        # w1 (belief half, f32)
            res_spec((state_dim, hidden_pad)),         # w1 (state half, f32)
            res_spec((1, hidden_pad)),                 # b1
            res_spec((hidden_pad, hidden_pad)),        # w2
            res_spec((1, hidden_pad)),                 # b2
            res_spec((hidden_pad, hidden_pad)),        # w3
            res_spec((1, hidden_pad)),                 # b3
            res_spec((1, hidden_pad)),                 # w4 row (f32)
            pl.BlockSpec(memory_space=pltpu.MemorySpace.SMEM),   # b4 scalar
        ],
        out_specs=pl.BlockSpec((1, block_b), lambda i: (0, i)),  # lane-dense output
        compiler_params=pltpu.CompilerParams(
            dimension_semantics=("parallel",),
            vmem_limit_bytes=vmem_limit,
        ),
        cost_estimate=cost,
    )(
        belief, state,
        packed["w1b"], packed["w1s"], packed["b1"],
        packed["w2"], packed["b2"],
        packed["w3"], packed["b3"],
        packed["w4_row"], packed["b4"],
    )
    return out.reshape(-1)[:B]    # drop batch padding, squeeze(dim=1)


# ----------------------------------------------------------------------------- params
def init_params(key, belief_size, state_size, hidden_size):
    """Deterministic synthetic params, torch Linear math but stored (in, out)."""
    ks = jax.random.split(key, 8)
    d_in = belief_size + state_size

    def u(k, shape, fan_in):
        return (jax.random.uniform(k, shape, jnp.float32, -1.0, 1.0)
                / jnp.sqrt(jnp.float32(fan_in)))

    return {
        "w1": u(ks[0], (d_in, hidden_size), d_in),
        "b1": u(ks[1], (hidden_size,), d_in),
        "w2": u(ks[2], (hidden_size, hidden_size), hidden_size),
        "b2": u(ks[3], (hidden_size,), hidden_size),
        "w3": u(ks[4], (hidden_size, hidden_size), hidden_size),
        "b3": u(ks[5], (hidden_size,), hidden_size),
        "w4": u(ks[6], (hidden_size, 1), hidden_size),
        "b4": u(ks[7], (1,), hidden_size),
    }


def pack_params(params, belief_size, compute_dtype=jnp.bfloat16):
    """Split fc1's weight into belief/state halves (so the kernel consumes the
    raw, un-concatenated inputs), zero-pad the hidden dim to a lane multiple
    (math-preserving: padded columns stay 0 through bias+ReLU, padded
    contraction rows are 0), and cast the square weights to the MXU compute
    dtype.  Done once, outside the per-step forward."""
    d_in, hidden = params["w1"].shape
    hidden_pad = _round_up(hidden, LANE)

    def pad_cols(a):
        return jnp.pad(a, ((0, 0), (0, hidden_pad - a.shape[1])))

    def pad_sq(a):
        return jnp.pad(a, ((0, hidden_pad - a.shape[0]), (0, hidden_pad - a.shape[1])))

    packed = {
        # fc1 halves stay f32: inputs arrive as f32 and d_in is tiny, so the f32
        # MXU passes are cheap and unaligned contraction dims remain fully safe.
        "w1b": pad_cols(params["w1"][:belief_size]).astype(jnp.float32),
        "w1s": pad_cols(params["w1"][belief_size:]).astype(jnp.float32),
        "b1": pad_cols(params["b1"][None, :]).astype(jnp.float32),
        "w2": pad_sq(params["w2"]).astype(compute_dtype),
        "b2": pad_cols(params["b2"][None, :]).astype(jnp.float32),
        "w3": pad_sq(params["w3"]).astype(compute_dtype),
        "b3": pad_cols(params["b3"][None, :]).astype(jnp.float32),
        # fc4 runs as a VPU multiply + lane reduction; keep it f32, as a row.
        "w4_row": pad_cols(params["w4"].T).astype(jnp.float32),
        "b4": params["b4"].reshape(1, 1).astype(jnp.float32),
    }
    meta = {
        "hidden": hidden,
        "hidden_pad": hidden_pad,
        "compute_dtype": compute_dtype,
    }
    return packed, meta


# ----------------------------------------------------------------------------- reference
def reference_forward(belief, state, params):
    x = jnp.concatenate([belief, state], axis=1)
    h = jax.nn.relu(x @ params["w1"] + params["b1"])
    h = jax.nn.relu(h @ params["w2"] + params["b2"])
    h = jax.nn.relu(h @ params["w3"] + params["b3"])
    return (h @ params["w4"])[:, 0] + params["b4"][0]


if __name__ == "__main__":
    belief_size, state_size, hidden_size = 24, 8, 32
    batch = 8

    key = jax.random.PRNGKey(0)
    k_b, k_s, k_p = jax.random.split(key, 3)

    belief = jax.random.normal(k_b, (batch, belief_size), jnp.float32)
    state = jax.random.normal(k_s, (batch, state_size), jnp.float32)
    params = init_params(k_p, belief_size, state_size, hidden_size)

    ref = reference_forward(belief, state, params)

    # f32 compute path: structural check against the plain-JAX reference.
    packed32, meta32 = pack_params(params, belief_size, compute_dtype=jnp.float32)
    out32 = jax.block_until_ready(value_model_forward(belief, state, packed32, meta32))
    assert out32.shape == (batch,)
    assert jnp.allclose(out32, ref, atol=1e-4, rtol=1e-4)

    # bf16 compute path (default fast path): bf16 MXU for fc2/fc3, f32 accumulation.
    packed16, meta16 = pack_params(params, belief_size, compute_dtype=jnp.bfloat16)
    out16 = jax.block_until_ready(value_model_forward(belief, state, packed16, meta16))
    assert out16.shape == (batch,)
    assert jnp.allclose(out16, ref, atol=5e-2, rtol=5e-2)

    # Multi-tile, non-divisible batch: exercises batch padding, the grid>=2
    # (v7x megacore-friendly) tiling, and the lane-dense multi-block output.
    batch2 = 300
    k_b2, k_s2 = jax.random.split(jax.random.PRNGKey(1), 2)
    belief2 = jax.random.normal(k_b2, (batch2, belief_size), jnp.float32)
    state2 = jax.random.normal(k_s2, (batch2, state_size), jnp.float32)
    ref2 = reference_forward(belief2, state2, params)
    out2 = jax.block_until_ready(value_model_forward(belief2, state2, packed16, meta16))
    assert out2.shape == (batch2,)
    assert jnp.allclose(out2, ref2, atol=5e-2, rtol=5e-2)

    print("KERNEL_OK")
</pallas_src>

<mosaic_0001>
module attributes {stable_mosaic.version = 11 : i64} {
  func.func @value_model_kernel(%arg0: i32, %arg1: memref<8x24xf32, #tpu.memory_space<vmem>>, %arg2: memref<8x8xf32, #tpu.memory_space<vmem>>, %arg3: memref<24x128xf32, #tpu.memory_space<vmem>>, %arg4: memref<8x128xf32, #tpu.memory_space<vmem>>, %arg5: memref<1x128xf32, #tpu.memory_space<vmem>>, %arg6: memref<128x128xf32, #tpu.memory_space<vmem>>, %arg7: memref<1x128xf32, #tpu.memory_space<vmem>>, %arg8: memref<128x128xf32, #tpu.memory_space<vmem>>, %arg9: memref<1x128xf32, #tpu.memory_space<vmem>>, %arg10: memref<1x128xf32, #tpu.memory_space<vmem>>, %arg11: memref<1x1xf32, #tpu.memory_space<smem>>, %arg12: memref<1x8xf32, #tpu.memory_space<vmem>>) attributes {dimension_semantics = [#tpu.dimension_semantics<parallel>], iteration_bounds = array<i64: 1>, scalar_prefetch = 0 : i64, scratch_operands = 0 : i64, tpu.core_type = #tpu.core_type<tc>, window_params = [{transform_indices = @transform_0, window_bounds = array<i64: 8, 24>}, {transform_indices = @transform_1, window_bounds = array<i64: 8, 8>}, {pipeline_mode = #tpu.pipeline_mode<synchronous>, transform_indices = @transform_2, window_bounds = array<i64: 24, 128>}, {pipeline_mode = #tpu.pipeline_mode<synchronous>, transform_indices = @transform_3, window_bounds = array<i64: 8, 128>}, {pipeline_mode = #tpu.pipeline_mode<synchronous>, transform_indices = @transform_4, window_bounds = array<i64: 1, 128>}, {pipeline_mode = #tpu.pipeline_mode<synchronous>, transform_indices = @transform_5, window_bounds = array<i64: 128, 128>}, {pipeline_mode = #tpu.pipeline_mode<synchronous>, transform_indices = @transform_6, window_bounds = array<i64: 1, 128>}, {pipeline_mode = #tpu.pipeline_mode<synchronous>, transform_indices = @transform_7, window_bounds = array<i64: 128, 128>}, {pipeline_mode = #tpu.pipeline_mode<synchronous>, transform_indices = @transform_8, window_bounds = array<i64: 1, 128>}, {pipeline_mode = #tpu.pipeline_mode<synchronous>, transform_indices = @transform_9, window_bounds = array<i64: 1, 128>}, {transform_indices = @transform_10, window_bounds = array<i64: 1, 1>}, {transform_indices = @transform_11, window_bounds = array<i64: 1, 8>}]} {
    %c0 = arith.constant 0 : index
    %c0_0 = arith.constant 0 : index
    %0 = vector.load %arg1[%c0, %c0_0] : memref<8x24xf32, #tpu.memory_space<vmem>>, vector<8x24xf32>
    %c0_1 = arith.constant 0 : index
    %c0_2 = arith.constant 0 : index
    %1 = vector.load %arg3[%c0_1, %c0_2] : memref<24x128xf32, #tpu.memory_space<vmem>>, vector<24x128xf32>
    %cst = arith.constant dense<0.000000e+00> : vector<8x128xf32>
    %2 = tpu.matmul %0, %1, %cst {dimension_numbers = #tpu.dot_dimension_numbers<[1], [0], [0], [1], [0, 0, 1, 1], [], []>} : vector<8x24xf32>, vector<24x128xf32>, vector<8x128xf32> -> vector<8x128xf32>
    %c0_3 = arith.constant 0 : index
    %c0_4 = arith.constant 0 : index
    %3 = vector.load %arg2[%c0_3, %c0_4] : memref<8x8xf32, #tpu.memory_space<vmem>>, vector<8x8xf32>
    %c0_5 = arith.constant 0 : index
    %c0_6 = arith.constant 0 : index
    %4 = vector.load %arg4[%c0_5, %c0_6] : memref<8x128xf32, #tpu.memory_space<vmem>>, vector<8x128xf32>
    %cst_7 = arith.constant dense<0.000000e+00> : vector<8x128xf32>
    %5 = tpu.matmul %3, %4, %cst_7 {dimension_numbers = #tpu.dot_dimension_numbers<[1], [0], [0], [1], [0, 0, 1, 1], [], []>} : vector<8x8xf32>, vector<8x128xf32>, vector<8x128xf32> -> vector<8x128xf32>
    %6 = arith.addf %2, %5 : vector<8x128xf32>
    %c0_8 = arith.constant 0 : index
    %c0_9 = arith.constant 0 : index
    %7 = vector.load %arg5[%c0_8, %c0_9] : memref<1x128xf32, #tpu.memory_space<vmem>>, vector<1x128xf32>
    %8 = vector.broadcast %7 : vector<1x128xf32> to vector<8x128xf32>
    %9 = arith.addf %6, %8 : vector<8x128xf32>
    %cst_10 = arith.constant 0.000000e+00 : f32
    %10 = vector.broadcast %cst_10 : f32 to vector<8x128xf32>
    %11 = arith.maximumf %9, %10 : vector<8x128xf32>
    %c0_11 = arith.constant 0 : index
    %c0_12 = arith.constant 0 : index
    %12 = vector.load %arg6[%c0_11, %c0_12] : memref<128x128xf32, #tpu.memory_space<vmem>>, vector<128x128xf32>
    %cst_13 = arith.constant dense<0.000000e+00> : vector<8x128xf32>
    %13 = tpu.matmul %11, %12, %cst_13 {dimension_numbers = #tpu.dot_dimension_numbers<[1], [0], [0], [1], [0, 0, 1, 1], [], []>} : vector<8x128xf32>, vector<128x128xf32>, vector<8x128xf32> -> vector<8x128xf32>
    %c0_14 = arith.constant 0 : index
    %c0_15 = arith.constant 0 : index
    %14 = vector.load %arg7[%c0_14, %c0_15] : memref<1x128xf32, #tpu.memory_space<vmem>>, vector<1x128xf32>
    %15 = vector.broadcast %14 : vector<1x128xf32> to vector<8x128xf32>
    %16 = arith.addf %13, %15 : vector<8x128xf32>
    %cst_16 = arith.constant 0.000000e+00 : f32
    %17 = vector.broadcast %cst_16 : f32 to vector<8x128xf32>
    %18 = arith.maximumf %16, %17 : vector<8x128xf32>
    %c0_17 = arith.constant 0 : index
    %c0_18 = arith.constant 0 : index
    %19 = vector.load %arg8[%c0_17, %c0_18] : memref<128x128xf32, #tpu.memory_space<vmem>>, vector<128x128xf32>
    %cst_19 = arith.constant dense<0.000000e+00> : vector<8x128xf32>
    %20 = tpu.matmul %18, %19, %cst_19 {dimension_numbers = #tpu.dot_dimension_numbers<[1], [0], [0], [1], [0, 0, 1, 1], [], []>} : vector<8x128xf32>, vector<128x128xf32>, vector<8x128xf32> -> vector<8x128xf32>
    %c0_20 = arith.constant 0 : index
    %c0_21 = arith.constant 0 : index
    %21 = vector.load %arg9[%c0_20, %c0_21] : memref<1x128xf32, #tpu.memory_space<vmem>>, vector<1x128xf32>
    %22 = vector.broadcast %21 : vector<1x128xf32> to vector<8x128xf32>
    %23 = arith.addf %20, %22 : vector<8x128xf32>
    %cst_22 = arith.constant 0.000000e+00 : f32
    %24 = vector.broadcast %cst_22 : f32 to vector<8x128xf32>
    %25 = arith.maximumf %23, %24 : vector<8x128xf32>
    %c0_23 = arith.constant 0 : index
    %c0_24 = arith.constant 0 : index
    %26 = vector.load %arg10[%c0_23, %c0_24] : memref<1x128xf32, #tpu.memory_space<vmem>>, vector<1x128xf32>
    %27 = vector.broadcast %26 : vector<1x128xf32> to vector<8x128xf32>
    %28 = arith.mulf %25, %27 : vector<8x128xf32>
    %cst_25 = arith.constant dense<0.000000e+00> : vector<8xf32>
    %29 = vector.multi_reduction <add>, %28, %cst_25 [1] : vector<8x128xf32> to vector<8xf32>
    %30 = vector.shape_cast %29 : vector<8xf32> to vector<8x1xf32>
    %c0_26 = arith.constant 0 : index
    %c0_27 = arith.constant 0 : index
    %31 = memref.load %arg11[%c0_26, %c0_27] : memref<1x1xf32, #tpu.memory_space<smem>>
    %32 = vector.broadcast %31 : f32 to vector<8x1xf32>
    %33 = arith.addf %30, %32 : vector<8x1xf32>
    %34 = vector.shape_cast %33 : vector<8x1xf32> to vector<1x8xf32>
    %c0_28 = arith.constant 0 : index
    %c0_29 = arith.constant 0 : index
    %35 = vector.load %arg12[%c0_28, %c0_29] : memref<1x8xf32, #tpu.memory_space<vmem>>, vector<1x8xf32>
    tpu.vector_store %arg12[%c0_28, %c0_29], %34 {strides = array<i32>} : memref<1x8xf32, #tpu.memory_space<vmem>>, vector<1x8xf32>,
    return
  }
  func.func @transform_0(%arg0: i32) -> (i32, i32) {
    %c0_i32 = arith.constant 0 : i32
    %c0_i32_0 = arith.constant 0 : i32
    return %arg0, %c0_i32 : i32, i32
  }
  func.func @transform_1(%arg0: i32) -> (i32, i32) {
    %c0_i32 = arith.constant 0 : i32
    %c0_i32_0 = arith.constant 0 : i32
    return %arg0, %c0_i32 : i32, i32
  }
  func.func @transform_2(%arg0: i32) -> (i32, i32) {
    %c0_i32 = arith.constant 0 : i32
    %c0_i32_0 = arith.constant 0 : i32
    %c0_i32_1 = arith.constant 0 : i32
    return %c0_i32, %c0_i32_0 : i32, i32
  }
  func.func @transform_3(%arg0: i32) -> (i32, i32) {
    %c0_i32 = arith.constant 0 : i32
    %c0_i32_0 = arith.constant 0 : i32
    %c0_i32_1 = arith.constant 0 : i32
    return %c0_i32, %c0_i32_0 : i32, i32
  }
  func.func @transform_4(%arg0: i32) -> (i32, i32) {
    %c0_i32 = arith.constant 0 : i32
    %c0_i32_0 = arith.constant 0 : i32
    %c0_i32_1 = arith.constant 0 : i32
    return %c0_i32, %c0_i32_0 : i32, i32
  }
  func.func @transform_5(%arg0: i32) -> (i32, i32) {
    %c0_i32 = arith.constant 0 : i32
    %c0_i32_0 = arith.constant 0 : i32
    %c0_i32_1 = arith.constant 0 : i32
    return %c0_i32, %c0_i32_0 : i32, i32
  }
  func.func @transform_6(%arg0: i32) -> (i32, i32) {
    %c0_i32 = arith.constant 0 : i32
    %c0_i32_0 = arith.constant 0 : i32
    %c0_i32_1 = arith.constant 0 : i32
    return %c0_i32, %c0_i32_0 : i32, i32
  }
  func.func @transform_7(%arg0: i32) -> (i32, i32) {
    %c0_i32 = arith.constant 0 : i32
    %c0_i32_0 = arith.constant 0 : i32
    %c0_i32_1 = arith.constant 0 : i32
    return %c0_i32, %c0_i32_0 : i32, i32
  }
  func.func @transform_8(%arg0: i32) -> (i32, i32) {
    %c0_i32 = arith.constant 0 : i32
    %c0_i32_0 = arith.constant 0 : i32
    %c0_i32_1 = arith.constant 0 : i32
    return %c0_i32, %c0_i32_0 : i32, i32
  }
  func.func @transform_9(%arg0: i32) -> (i32, i32) {
    %c0_i32 = arith.constant 0 : i32
    %c0_i32_0 = arith.constant 0 : i32
    %c0_i32_1 = arith.constant 0 : i32
    return %c0_i32, %c0_i32_0 : i32, i32
  }
  func.func @transform_10(%arg0: i32) -> (i32, i32) {
    %c0_i32 = arith.constant 0 : i32
    %c0_i32_0 = arith.constant 0 : i32
    %c0_i32_1 = arith.constant 0 : i32
    return %c0_i32, %c0_i32_0 : i32, i32
  }
  func.func @transform_11(%arg0: i32) -> (i32, i32) {
    %c0_i32 = arith.constant 0 : i32
    %c0_i32_0 = arith.constant 0 : i32
    return %c0_i32, %arg0 : i32, i32
  }
}

</mosaic_0001>

<llo_original>
// kernel: tpu_custom_call.1
$region0: #{tpu_custom_call.1}
  #allocation0 [shape = 'u32[]', space=smem, size = 0x4, offset = 0x4, fixed_abs, tag = 'smem constant byte address 0x4 - core index']
  #allocation1 [shape = 'u32[144,128]{1,0:T(1,128)}', space=vmem, size = 0x12000, scoped, tag = 'internal scratch']
  #allocation2 [shape = 'f32[1,1]{1,0:T(1,128)S(6)}', space=smem, size = 0x200, scoped, tag = 'scoped memory for tpu_custom_call.1']
  %s0 = inlined_call_operand.hbm [shape: f32[8,24], index: 0, kind: input, shape index: {}]
  %s1 = inlined_call_operand.hbm [shape: f32[8,8], index: 1, kind: input, shape index: {}]
  %s2 = inlined_call_operand.hbm [shape: f32[24,128], index: 2, kind: input, shape index: {}]
  %s3 = inlined_call_operand.vmem [shape: f32[8,128], index: 3, kind: input, shape index: {}]
  %s4 = inlined_call_operand.vmem [shape: f32[1,128], index: 4, kind: input, shape index: {}]
  %s5 = inlined_call_operand.hbm [shape: f32[128,128], index: 5, kind: input, shape index: {}]
  %s6 = inlined_call_operand.vmem [shape: f32[1,128], index: 6, kind: input, shape index: {}]
  %s7 = inlined_call_operand.hbm [shape: f32[128,128], index: 7, kind: input, shape index: {}]
  %s8 = inlined_call_operand.vmem [shape: f32[1,128], index: 8, kind: input, shape index: {}]
  %s9 = inlined_call_operand.vmem [shape: f32[1,128], index: 9, kind: input, shape index: {}]
  %s10 = inlined_call_operand.<no memory space> [shape: f32[1,1], index: 10, kind: input, shape index: {}]
  %s11 = inlined_call_operand.hbm [shape: f32[1,8], index: 11, kind: output, shape index: {}]
  %s12 = sld [smem:[#allocation0]]
  $region74: #{tpu_custom_call.1} parent=0
    _
  %s14 = ssub.s32 1, %s12
  %s15 = scalar_select 0, %s14, %s12
  %16 = sst [smem:[#allocation2]] %s10
  $region1: #{tpu_custom_call.1} parent=0
    #allocation3 [shape = 'u8[4096]{0}', space=vmem, size = 0x1000, scoped, tag = 'input window, operand 0, single buffered']
    #allocation4 [shape = 's32[1]{0}', space=sflag, size = 0x4, scoped, tag = 'scoped memory for tpu_custom_call.1']
    #allocation5 [shape = 's32[1]{0}', space=sflag, size = 0x4, scoped, tag = 'scoped memory for tpu_custom_call.1']
    #allocation6 [shape = 'u8[4096]{0}', space=vmem, size = 0x1000, scoped, tag = 'input window, operand 1, single buffered']
    #allocation7 [shape = 's32[1]{0}', space=sflag, size = 0x4, scoped, tag = 'scoped memory for tpu_custom_call.1']
    #allocation8 [shape = 'u8[12288]{0}', space=vmem, size = 0x3000, scoped, tag = 'input window, operand 2, single buffered']
    #allocation9 [shape = 'u8[65536]{0}', space=vmem, size = 0x10000, scoped, tag = 'input window, operand 5, single buffered']
    #allocation10 [shape = 's32[1]{0}', space=sflag, size = 0x4, scoped, tag = 'scoped memory for tpu_custom_call.1']
    #allocation11 [shape = 'u8[65536]{0}', space=vmem, size = 0x10000, scoped, tag = 'input window, operand 7, single buffered']
    #allocation12 [shape = 'u8[512]{0}', space=vmem, size = 0x400, scoped, tag = 'output window, operand 0, single buffered']
    %17 = vsyncpa [#allocation4], 0
    %18 = vsyncpa [#allocation7], 0
    %19 = vsyncpa [#allocation10], 0
    %20 = vsyncpa [#allocation5], 0
    // Predicated region
    $region2: #{tpu_custom_call.1} parent=1 // pred_check
      _
    $region3: #{tpu_custom_call.1} parent=1 // pred_check_branch
      %22 = sbr.rel (0) target = $region5
    $region4: #{tpu_custom_call.1} parent=1 // pred_region
      %s24 = ssub.s32 128, 128
      %25 = vsyncadd [#allocation4], %s24
      %s27 = sshll.u32 [#allocation3], 4
      %s28 = int_to_ptr.vmem [resolvable:$true] %s27
      %30 = dma.hbm_to_vmem [thread:$0]  %s0, 128, %s28, [#allocation4]
    $region5: #{tpu_custom_call.1} parent=1 // pred_fallthru
      _
    // Predicated region
    $region6: #{tpu_custom_call.1} parent=1 // pred_check
      _
    $region7: #{tpu_custom_call.1} parent=1 // pred_check_branch
      %32 = sbr.rel (0) target = $region9
    $region8: #{tpu_custom_call.1} parent=1 // pred_region
      %s34 = ssub.s32 128, 128
      %35 = vsyncadd [#allocation7], %s34
      %s37 = sshll.u32 [#allocation6], 4
      %s38 = int_to_ptr.vmem [resolvable:$true] %s37
      %40 = dma.hbm_to_vmem [thread:$0]  %s1, 128, %s38, [#allocation7]
    $region9: #{tpu_custom_call.1} parent=1 // pred_fallthru
      _
    // Predicated region
    $region10: #{tpu_custom_call.1} parent=1 // pred_check
      _
    $region11: #{tpu_custom_call.1} parent=1 // pred_check_branch
      %42 = sbr.rel (0) target = $region13
    $region12: #{tpu_custom_call.1} parent=1 // pred_region
      %s44 = ssub.s32 384, 384
      %45 = vsyncadd [#allocation7], %s44
      %s46 = sshll.u32 [#allocation8], 4
      %s47 = int_to_ptr.vmem [resolvable:$true] %s46
      %52 = dma.hbm_to_vmem [thread:$0]  %s2, 384, %s47, [#allocation7], 128, 128, 8
    $region13: #{tpu_custom_call.1} parent=1 // pred_fallthru
      _
    // Predicated region
    $region14: #{tpu_custom_call.1} parent=1 // pred_check
      _
    $region15: #{tpu_custom_call.1} parent=1 // pred_check_branch
      %54 = sbr.rel (0) target = $region17
    $region16: #{tpu_custom_call.1} parent=1 // pred_region
      _
    $region17: #{tpu_custom_call.1} parent=1 // pred_fallthru
      _
    // Predicated region
    $region18: #{tpu_custom_call.1} parent=1 // pred_check
      _
    $region19: #{tpu_custom_call.1} parent=1 // pred_check_branch
      %56 = sbr.rel (0) target = $region21
    $region20: #{tpu_custom_call.1} parent=1 // pred_region
      _
    $region21: #{tpu_custom_call.1} parent=1 // pred_fallthru
      _
    // Predicated region
    $region22: #{tpu_custom_call.1} parent=1 // pred_check
      _
    $region23: #{tpu_custom_call.1} parent=1 // pred_check_branch
      %58 = sbr.rel (0) target = $region25
    $region24: #{tpu_custom_call.1} parent=1 // pred_region
      %s60 = ssub.s32 2048, 2048
      %61 = vsyncadd [#allocation10], %s60
      %s62 = sshll.u32 [#allocation9], 4
      %s63 = int_to_ptr.vmem [resolvable:$true] %s62
      %68 = dma.hbm_to_vmem [thread:$0]  %s5, 2048, %s63, [#allocation10], 128, 128, 8
    $region25: #{tpu_custom_call.1} parent=1 // pred_fallthru
      _
    // Predicated region
    $region26: #{tpu_custom_call.1} parent=1 // pred_check
      _
    $region27: #{tpu_custom_call.1} parent=1 // pred_check_branch
      %70 = sbr.rel (0) target = $region29
    $region28: #{tpu_custom_call.1} parent=1 // pred_region
      _
    $region29: #{tpu_custom_call.1} parent=1 // pred_fallthru
      _
    // Predicated region
    $region30: #{tpu_custom_call.1} parent=1 // pred_check
      _
    $region31: #{tpu_custom_call.1} parent=1 // pred_check_branch
      %72 = sbr.rel (0) target = $region33
    $region32: #{tpu_custom_call.1} parent=1 // pred_region
      %s74 = ssub.s32 2048, 2048
      %75 = vsyncadd [#allocation10], %s74
      %s76 = sshll.u32 [#allocation11], 4
      %s77 = int_to_ptr.vmem [resolvable:$true] %s76
      %82 = dma.hbm_to_vmem [thread:$0]  %s7, 2048, %s77, [#allocation10], 128, 128, 8
    $region33: #{tpu_custom_call.1} parent=1 // pred_fallthru
      _
    // Predicated region
    $region34: #{tpu_custom_call.1} parent=1 // pred_check
      _
    $region35: #{tpu_custom_call.1} parent=1 // pred_check_branch
      %84 = sbr.rel (0) target = $region37
    $region36: #{tpu_custom_call.1} parent=1 // pred_region
      _
    $region37: #{tpu_custom_call.1} parent=1 // pred_fallthru
      _
    // Predicated region
    $region38: #{tpu_custom_call.1} parent=1 // pred_check
      _
    $region39: #{tpu_custom_call.1} parent=1 // pred_check_branch
      %86 = sbr.rel (0) target = $region41
    $region40: #{tpu_custom_call.1} parent=1 // pred_region
      _
    $region41: #{tpu_custom_call.1} parent=1 // pred_fallthru
      _
    // Predicated region
    $region42: #{tpu_custom_call.1} parent=1 // pred_check
      _
    $region43: #{tpu_custom_call.1} parent=1 // pred_check_branch
      %88 = sbr.rel (0) target = $region45
    $region44: #{tpu_custom_call.1} parent=1 // pred_region
      _
    $region45: #{tpu_custom_call.1} parent=1 // pred_fallthru
      _
    // Predicated region
    $region46: #{tpu_custom_call.1} parent=1 // pred_check
      _
    $region47: #{tpu_custom_call.1} parent=1 // pred_check_branch
      %90 = sbr.rel (0) target = $region49
    $region48: #{tpu_custom_call.1} parent=1 // pred_region
      %91 = dma.done [#allocation4], 128
    $region49: #{tpu_custom_call.1} parent=1 // pred_fallthru
      _
    // Predicated region
    $region50: #{tpu_custom_call.1} parent=1 // pred_check
      _
    $region51: #{tpu_custom_call.1} parent=1 // pred_check_branch
      %93 = sbr.rel (0) target = $region53
    $region52: #{tpu_custom_call.1} parent=1 // pred_region
      %94 = dma.done [#allocation7], 128
    $region53: #{tpu_custom_call.1} parent=1 // pred_fallthru
      _
    // Predicated region
    $region54: #{tpu_custom_call.1} parent=1 // pred_check
      _
    $region55: #{tpu_custom_call.1} parent=1 // pred_check_branch
      %96 = sbr.rel (0) target = $region57
    $region56: #{tpu_custom_call.1} parent=1 // pred_region
      %97 = dma.done [#allocation7], 384
    $region57: #{tpu_custom_call.1} parent=1 // pred_fallthru
      _
    // Predicated region
    $region58: #{tpu_custom_call.1} parent=1 // pred_check
      _
    $region59: #{tpu_custom_call.1} parent=1 // pred_check_branch
      %99 = sbr.rel (0) target = $region61
    $region60: #{tpu_custom_call.1} parent=1 // pred_region
      %100 = dma.done [#allocation10], 2048
    $region61: #{tpu_custom_call.1} parent=1 // pred_fallthru
      _
    // Predicated region
    $region62: #{tpu_custom_call.1} parent=1 // pred_check
      _
    $region63: #{tpu_custom_call.1} parent=1 // pred_check_branch
      %102 = sbr.rel (0) target = $region65
    $region64: #{tpu_custom_call.1} parent=1 // pred_region
      %103 = dma.done [#allocation10], 2048
    $region65: #{tpu_custom_call.1} parent=1 // pred_fallthru
      _
    %v104 = vld [vmem:[#allocation3] sm:$0xff]
    %v105 = vld [vmem:[#allocation8] sm:$0xff]
    %v106 = vld [vmem:[#allocation8 + $0x8] sm:$0xff]
    %v107 = vld [vmem:[#allocation8 + $0x10] sm:$0xff]
    %v108 = vld [vmem:[#allocation6] sm:$0xff]
    %v109 = vld [vmem:[%s3] sm:$0xff]
    %vm110 = vcmask 64512
    %v112 = vsel %vm110, %v108, 0
    %114 = vmatprep.subr.mxu0 0.0
    %115 = vmatpush1.msra.mxu0 %v109
    %116 = vmatprep.subr.mxu0 0.0
    %117 = vmatpush1.msra.mxu0 0.0
    %118 = vmatprep.subr.mxu0 0.0
    %119 = vmatpush1.msra.mxu0 0.0
    %120 = vmatprep.subr.mxu0 0.0
    %121 = vmatpush1.msra.mxu0 0.0
    %122 = vmatprep.subr.mxu0 0.0
    %123 = vmatpush1.msra.mxu0 0.0
    %124 = vmatprep.subr.mxu0 0.0
    %125 = vmatpush1.msra.mxu0 0.0
    %126 = vmatprep.subr.mxu0 0.0
    %127 = vmatpush1.msra.mxu0 0.0
    %128 = vmatprep.subr.mxu0 0.0
    %129 = vmatpush1.msra.mxu0 0.0
    %130 = vmatprep.subr.mxu0 0.0
    %131 = vmatpush1.msra.mxu0 0.0
    %132 = vmatprep.subr.mxu0 0.0
    %133 = vmatpush1.msra.mxu0 0.0
    %134 = vmatprep.subr.mxu0 0.0
    %135 = vmatpush1.msra.mxu0 0.0
    %136 = vmatprep.subr.mxu0 0.0
    %137 = vmatpush1.msra.mxu0 0.0
    %138 = vmatprep.subr.mxu0 0.0
    %139 = vmatpush1.msra.mxu0 0.0
    %140 = vmatprep.subr.mxu0 0.0
    %141 = vmatpush1.msra.mxu0 0.0
    %142 = vmatprep.subr.mxu0 0.0
    %143 = vmatpush1.msra.mxu0 0.0
    %144 = vmatprep.subr.mxu0 0.0
    %145 = vmatpush1.msra.mxu0 0.0
    %146 = vmatprep.subr.mxu0 0.0
    %147 = vmatpush1.msra.mxu0 0.0
    %148 = vmatprep.subr.mxu0 0.0
    %149 = vmatpush1.msra.mxu0 0.0
    %150 = vmatprep.subr.mxu0 0.0
    %151 = vmatpush1.msra.mxu0 0.0
    %152 = vmatprep.subr.mxu0 0.0
    %153 = vmatpush1.msra.mxu0 0.0
    %154 = vmatprep.subr.mxu0 0.0
    %155 = vmatpush1.msra.mxu0 0.0
    %156 = vmatprep.subr.mxu0 0.0
    %157 = vmatpush1.msra.mxu0 0.0
    %158 = vmatprep.subr.mxu0 0.0
    %159 = vmatpush1.msra.mxu0 0.0
    %160 = vmatprep.subr.mxu0 0.0
    %161 = vmatpush1.msra.mxu0 0.0
    %162 = vmatprep.subr.mxu0 0.0
    %163 = vmatpush1.msra.mxu0 0.0
    %164 = vmatprep.subr.mxu0 0.0
    %165 = vmatpush1.msra.mxu0 0.0
    %166 = vmatprep.subr.mxu0 0.0
    %167 = vmatpush1.msra.mxu0 0.0
    %168 = vmatprep.subr.mxu0 0.0
    %169 = vmatpush1.msra.mxu0 0.0
    %170 = vmatprep.subr.mxu0 0.0
    %171 = vmatpush1.msra.mxu0 0.0
    %172 = vmatprep.subr.mxu0 0.0
    %173 = vmatpush1.msra.mxu0 0.0
    %174 = vmatprep.subr.mxu0 0.0
    %175 = vmatpush1.msra.mxu0 0.0
    %176 = vmatprep.subr.mxu0 0.0
    %177 = vmatpush1.msra.mxu0 0.0
    %178 = vmatprep.mubr.f32.mxu0 0.0
    %179 = vmatmul.mubr.f32.gmra.mrb[0].mxu0 %v112
    %v180 = vpop.f32.mrb[0].mxu0
    %v181 = vadd.f32 0.0, %v180
    %v182 = vpop.f32.mrb[0].mxu0
    %183 = vdwg.mxu0
    %vm184 = vcmask 195584
    %v186 = vsel %vm184, %v104, 0
    %188 = vmatprep.subr.mxu0 0.0
    %189 = vmatpush1.msra.mxu0 %v105
    %190 = vmatprep.subr.mxu0 0.0
    %191 = vmatpush1.msra.mxu0 %v106
    %192 = vmatprep.subr.mxu0 0.0
    %193 = vmatpush1.msra.mxu0 %v107
    %194 = vmatprep.subr.mxu0 0.0
    %195 = vmatpush1.msra.mxu0 0.0
    %196 = vmatprep.subr.mxu0 0.0
    %197 = vmatpush1.msra.mxu0 0.0
    %198 = vmatprep.subr.mxu0 0.0
    %199 = vmatpush1.msra.mxu0 0.0
    %200 = vmatprep.subr.mxu0 0.0
    %201 = vmatpush1.msra.mxu0 0.0
    %202 = vmatprep.subr.mxu0 0.0
    %203 = vmatpush1.msra.mxu0 0.0
    %204 = vmatprep.subr.mxu0 0.0
    %205 = vmatpush1.msra.mxu0 0.0
    %206 = vmatprep.subr.mxu0 0.0
    %207 = vmatpush1.msra.mxu0 0.0
    %208 = vmatprep.subr.mxu0 0.0
    %209 = vmatpush1.msra.mxu0 0.0
    %210 = vmatprep.subr.mxu0 0.0
    %211 = vmatpush1.msra.mxu0 0.0
    %212 = vmatprep.subr.mxu0 0.0
    %213 = vmatpush1.msra.mxu0 0.0
    %214 = vmatprep.subr.mxu0 0.0
    %215 = vmatpush1.msra.mxu0 0.0
    %216 = vmatprep.subr.mxu0 0.0
    %217 = vmatpush1.msra.mxu0 0.0
    %218 = vmatprep.subr.mxu0 0.0
    %219 = vmatpush1.msra.mxu0 0.0
    %220 = vmatprep.subr.mxu0 0.0
    %221 = vmatpush1.msra.mxu0 0.0
    %222 = vmatprep.subr.mxu0 0.0
    %223 = vmatpush1.msra.mxu0 0.0
    %224 = vmatprep.subr.mxu0 0.0
    %225 = vmatpush1.msra.mxu0 0.0
    %226 = vmatprep.subr.mxu0 0.0
    %227 = vmatpush1.msra.mxu0 0.0
    %228 = vmatprep.subr.mxu0 0.0
    %229 = vmatpush1.msra.mxu0 0.0
    %230 = vmatprep.subr.mxu0 0.0
    %231 = vmatpush1.msra.mxu0 0.0
    %232 = vmatprep.subr.mxu0 0.0
    %233 = vmatpush1.msra.mxu0 0.0
    %234 = vmatprep.subr.mxu0 0.0
    %235 = vmatpush1.msra.mxu0 0.0
    %236 = vmatprep.subr.mxu0 0.0
    %237 = vmatpush1.msra.mxu0 0.0
    %238 = vmatprep.subr.mxu0 0.0
    %239 = vmatpush1.msra.mxu0 0.0
    %240 = vmatprep.subr.mxu0 0.0
    %241 = vmatpush1.msra.mxu0 0.0
    %242 = vmatprep.subr.mxu0 0.0
    %243 = vmatpush1.msra.mxu0 0.0
    %244 = vmatprep.subr.mxu0 0.0
    %245 = vmatpush1.msra.mxu0 0.0
    %246 = vmatprep.subr.mxu0 0.0
    %247 = vmatpush1.msra.mxu0 0.0
    %248 = vmatprep.subr.mxu0 0.0
    %249 = vmatpush1.msra.mxu0 0.0
    %250 = vmatprep.subr.mxu0 0.0
    %251 = vmatpush1.msra.mxu0 0.0
    %252 = vmatprep.mubr.f32.mxu0 0.0
    %253 = vmatmul.mubr.f32.gmra.mrb[0].mxu0 %v186
    %v254 = vpop.f32.mrb[0].mxu0
    %v255 = vadd.f32 %v181, %v254
    %v256 = vpop.f32.mrb[0].mxu0
    %257 = vdwg.mxu0
    %v258 = vld [vmem:[%s4] sm:$0x1]
    %v260 = vlaneseq
    %v261 = vshrl.u32 %v260, 7
    %v262 = vsub.s32 0, %v261
    %v263 = vrot.slane %v258, %v262
    %v265 = vadd.f32 %v255, %v263
    %v266 = vmax.f32 %v265, 0.0
    %v267 = vld [vmem:[#allocation9] sm:$0xff]
    %v268 = vld [vmem:[#allocation9 + $0x8] sm:$0xff]
    %v269 = vld [vmem:[#allocation9 + $0x10] sm:$0xff]
    %v270 = vld [vmem:[#allocation9 + $0x18] sm:$0xff]
    %v271 = vld [vmem:[#allocation9 + $0x20] sm:$0xff]
    %v272 = vld [vmem:[#allocation9 + $0x28] sm:$0xff]
    %v273 = vld [vmem:[#allocation9 + $0x30] sm:$0xff]
    %v274 = vld [vmem:[#allocation9 + $0x38] sm:$0xff]
    %v275 = vld [vmem:[#allocation9 + $0x40] sm:$0xff]
    %v276 = vld [vmem:[#allocation9 + $0x48] sm:$0xff]
    %v277 = vld [vmem:[#allocation9 + $0x50] sm:$0xff]
    %v278 = vld [vmem:[#allocation9 + $0x58] sm:$0xff]
    %v279 = vld [vmem:[#allocation9 + $0x60] sm:$0xff]
    %v280 = vld [vmem:[#allocation9 + $0x68] sm:$0xff]
    %v281 = vld [vmem:[#allocation9 + $0x70] sm:$0xff]
    %v282 = vld [vmem:[#allocation9 + $0x78] sm:$0xff]
    %v283 = vld [vmem:[%s6] sm:$0x1]
    %v285 = vlaneseq
    %v286 = vshrl.u32 %v285, 7
    %v287 = vsub.s32 0, %v286
    %v288 = vrot.slane %v283, %v287
    %290 = vmatprep.subr.mxu0 0.0
    %291 = vmatpush1.msra.mxu0 %v267
    %292 = vmatprep.subr.mxu0 0.0
    %293 = vmatpush1.msra.mxu0 %v268
    %294 = vmatprep.subr.mxu0 0.0
    %295 = vmatpush1.msra.mxu0 %v269
    %296 = vmatprep.subr.mxu0 0.0
    %297 = vmatpush1.msra.mxu0 %v270
    %298 = vmatprep.subr.mxu0 0.0
    %299 = vmatpush1.msra.mxu0 %v271
    %300 = vmatprep.subr.mxu0 0.0
    %301 = vmatpush1.msra.mxu0 %v272
    %302 = vmatprep.subr.mxu0 0.0
    %303 = vmatpush1.msra.mxu0 %v273
    %304 = vmatprep.subr.mxu0 0.0
    %305 = vmatpush1.msra.mxu0 %v274
    %306 = vmatprep.subr.mxu0 0.0
    %307 = vmatpush1.msra.mxu0 %v275
    %308 = vmatprep.subr.mxu0 0.0
    %309 = vmatpush1.msra.mxu0 %v276
    %310 = vmatprep.subr.mxu0 0.0
    %311 = vmatpush1.msra.mxu0 %v277
    %312 = vmatprep.subr.mxu0 0.0
    %313 = vmatpush1.msra.mxu0 %v278
    %314 = vmatprep.subr.mxu0 0.0
    %315 = vmatpush1.msra.mxu0 %v279
    %316 = vmatprep.subr.mxu0 0.0
    %317 = vmatpush1.msra.mxu0 %v280
    %318 = vmatprep.subr.mxu0 0.0
    %319 = vmatpush1.msra.mxu0 %v281
    %320 = vmatprep.subr.mxu0 0.0
    %321 = vmatpush1.msra.mxu0 %v282
    %322 = vmatprep.subr.mxu0 0.0
    %323 = vmatpush1.msra.mxu0 0.0
    %324 = vmatprep.subr.mxu0 0.0
    %325 = vmatpush1.msra.mxu0 0.0
    %326 = vmatprep.subr.mxu0 0.0
    %327 = vmatpush1.msra.mxu0 0.0
    %328 = vmatprep.subr.mxu0 0.0
    %329 = vmatpush1.msra.mxu0 0.0
    %330 = vmatprep.subr.mxu0 0.0
    %331 = vmatpush1.msra.mxu0 0.0
    %332 = vmatprep.subr.mxu0 0.0
    %333 = vmatpush1.msra.mxu0 0.0
    %334 = vmatprep.subr.mxu0 0.0
    %335 = vmatpush1.msra.mxu0 0.0
    %336 = vmatprep.subr.mxu0 0.0
    %337 = vmatpush1.msra.mxu0 0.0
    %338 = vmatprep.subr.mxu0 0.0
    %339 = vmatpush1.msra.mxu0 0.0
    %340 = vmatprep.subr.mxu0 0.0
    %341 = vmatpush1.msra.mxu0 0.0
    %342 = vmatprep.subr.mxu0 0.0
    %343 = vmatpush1.msra.mxu0 0.0
    %344 = vmatprep.subr.mxu0 0.0
    %345 = vmatpush1.msra.mxu0 0.0
    %346 = vmatprep.subr.mxu0 0.0
    %347 = vmatpush1.msra.mxu0 0.0
    %348 = vmatprep.subr.mxu0 0.0
    %349 = vmatpush1.msra.mxu0 0.0
    %350 = vmatprep.subr.mxu0 0.0
    %351 = vmatpush1.msra.mxu0 0.0
    %352 = vmatprep.subr.mxu0 0.0
    %353 = vmatpush1.msra.mxu0 0.0
    %354 = vmatprep.mubr.f32.mxu0 0.0
    %355 = vmatmul.mubr.f32.gmra.mrb[0].mxu0 %v266
    %v356 = vpop.f32.mrb[0].mxu0
    %v357 = vadd.f32 %v288, %v356
    %v358 = vpop.f32.mrb[0].mxu0
    %359 = vdwg.mxu0
    %v360 = vmax.f32 %v357, 0.0
    %v361 = vld [vmem:[#allocation11] sm:$0xff]
    %v362 = vld [vmem:[#allocation11 + $0x8] sm:$0xff]
    %v363 = vld [vmem:[#allocation11 + $0x10] sm:$0xff]
    %v364 = vld [vmem:[#allocation11 + $0x18] sm:$0xff]
    %v365 = vld [vmem:[#allocation11 + $0x20] sm:$0xff]
    %v366 = vld [vmem:[#allocation11 + $0x28] sm:$0xff]
    %v367 = vld [vmem:[#allocation11 + $0x30] sm:$0xff]
    %v368 = vld [vmem:[#allocation11 + $0x38] sm:$0xff]
    %v369 = vld [vmem:[#allocation11 + $0x40] sm:$0xff]
    %v370 = vld [vmem:[#allocation11 + $0x48] sm:$0xff]
    %v371 = vld [vmem:[#allocation11 + $0x50] sm:$0xff]
    %v372 = vld [vmem:[#allocation11 + $0x58] sm:$0xff]
    %v373 = vld [vmem:[#allocation11 + $0x60] sm:$0xff]
    %v374 = vld [vmem:[#allocation11 + $0x68] sm:$0xff]
    %v375 = vld [vmem:[#allocation11 + $0x70] sm:$0xff]
    %v376 = vld [vmem:[#allocation11 + $0x78] sm:$0xff]
    %v377 = vld [vmem:[%s8] sm:$0x1]
    %v379 = vlaneseq
    %v380 = vshrl.u32 %v379, 7
    %v381 = vsub.s32 0, %v380
    %v382 = vrot.slane %v377, %v381
    %384 = vmatprep.subr.mxu0 0.0
    %385 = vmatpush1.msra.mxu0 %v361
    %386 = vmatprep.subr.mxu0 0.0
    %387 = vmatpush1.msra.mxu0 %v362
    %388 = vmatprep.subr.mxu0 0.0
    %389 = vmatpush1.msra.mxu0 %v363
    %390 = vmatprep.subr.mxu0 0.0
    %391 = vmatpush1.msra.mxu0 %v364
    %392 = vmatprep.subr.mxu0 0.0
    %393 = vmatpush1.msra.mxu0 %v365
    %394 = vmatprep.subr.mxu0 0.0
    %395 = vmatpush1.msra.mxu0 %v366
    %396 = vmatprep.subr.mxu0 0.0
    %397 = vmatpush1.msra.mxu0 %v367
    %398 = vmatprep.subr.mxu0 0.0
    %399 = vmatpush1.msra.mxu0 %v368
    %400 = vmatprep.subr.mxu0 0.0
    %401 = vmatpush1.msra.mxu0 %v369
    %402 = vmatprep.subr.mxu0 0.0
    %403 = vmatpush1.msra.mxu0 %v370
    %404 = vmatprep.subr.mxu0 0.0
    %405 = vmatpush1.msra.mxu0 %v371
    %406 = vmatprep.subr.mxu0 0.0
    %407 = vmatpush1.msra.mxu0 %v372
    %408 = vmatprep.subr.mxu0 0.0
    %409 = vmatpush1.msra.mxu0 %v373
    %410 = vmatprep.subr.mxu0 0.0
    %411 = vmatpush1.msra.mxu0 %v374
    %412 = vmatprep.subr.mxu0 0.0
    %413 = vmatpush1.msra.mxu0 %v375
    %414 = vmatprep.subr.mxu0 0.0
    %415 = vmatpush1.msra.mxu0 %v376
    %416 = vmatprep.subr.mxu0 0.0
    %417 = vmatpush1.msra.mxu0 0.0
    %418 = vmatprep.subr.mxu0 0.0
    %419 = vmatpush1.msra.mxu0 0.0
    %420 = vmatprep.subr.mxu0 0.0
    %421 = vmatpush1.msra.mxu0 0.0
    %422 = vmatprep.subr.mxu0 0.0
    %423 = vmatpush1.msra.mxu0 0.0
    %424 = vmatprep.subr.mxu0 0.0
    %425 = vmatpush1.msra.mxu0 0.0
    %426 = vmatprep.subr.mxu0 0.0
    %427 = vmatpush1.msra.mxu0 0.0
    %428 = vmatprep.subr.mxu0 0.0
    %429 = vmatpush1.msra.mxu0 0.0
    %430 = vmatprep.subr.mxu0 0.0
    %431 = vmatpush1.msra.mxu0 0.0
    %432 = vmatprep.subr.mxu0 0.0
    %433 = vmatpush1.msra.mxu0 0.0
    %434 = vmatprep.subr.mxu0 0.0
    %435 = vmatpush1.msra.mxu0 0.0
    %436 = vmatprep.subr.mxu0 0.0
    %437 = vmatpush1.msra.mxu0 0.0
    %438 = vmatprep.subr.mxu0 0.0
    %439 = vmatpush1.msra.mxu0 0.0
    %440 = vmatprep.subr.mxu0 0.0
    %441 = vmatpush1.msra.mxu0 0.0
    %442 = vmatprep.subr.mxu0 0.0
    %443 = vmatpush1.msra.mxu0 0.0
    %444 = vmatprep.subr.mxu0 0.0
    %445 = vmatpush1.msra.mxu0 0.0
    %446 = vmatprep.subr.mxu0 0.0
    %447 = vmatpush1.msra.mxu0 0.0
    %448 = vmatprep.mubr.f32.mxu0 0.0
    %449 = vmatmul.mubr.f32.gmra.mrb[0].mxu0 %v360
    %v450 = vpop.f32.mrb[0].mxu0
    %v451 = vadd.f32 %v382, %v450
    %v452 = vpop.f32.mrb[0].mxu0
    %453 = vdwg.mxu0
    %v454 = vmax.f32 %v451, 0.0
    %v455 = vld [vmem:[%s9] sm:$0x1]
    %v457 = vlaneseq
    %v458 = vshrl.u32 %v457, 7
    %v459 = vsub.s32 0, %v458
    %v460 = vrot.slane %v455, %v459
    %v462 = vmul.f32 %v454, %v460
    %463 = vadd.xlane.f32.xlu0 %v462
    %v464 = vpop.xlane.xlu0 %463
    %s465 = sld [smem:[#allocation2]]
    %v466 = vstv %s465
    %v467 = vadd.f32 %v464, %v466
    %v469 = vlaneseq
    %v470 = vand.u32 %v469, 127
    %v471 = vlaneseq
    %v472 = vshrl.u32 %v471, 7
    %v473 = vsub.s32 %v470, %v472
    %v474 = vrot.slane %v467, %v473
    %vm476 = vcmask 57344
    %477 = vst.msk [vmem:[#allocation12] sm:$0x1] %vm476, %v474
    // Predicated region
    $region66: #{tpu_custom_call.1} parent=1 // pred_check
      _
    $region67: #{tpu_custom_call.1} parent=1 // pred_check_branch
      %479 = sbr.rel (0) target = $region69
    $region68: #{tpu_custom_call.1} parent=1 // pred_region
      %s481 = ssub.s32 16, 16
      %482 = vsyncadd [#allocation5], %s481
      %s484 = sshll.u32 [#allocation12], 4
      %s485 = int_to_ptr.vmem [resolvable:$true] %s484
      %487 = dma.vmem_to_hbm [thread:$0]  %s485, 16, %s11, [#allocation5]
    $region69: #{tpu_custom_call.1} parent=1 // pred_fallthru
      _
    // Predicated region
    $region70: #{tpu_custom_call.1} parent=1 // pred_check
      _
    $region71: #{tpu_custom_call.1} parent=1 // pred_check_branch
      %489 = sbr.rel (0) target = $region73
    $region72: #{tpu_custom_call.1} parent=1 // pred_region
      %490 = dma.done [#allocation5], 16
    $region73: #{tpu_custom_call.1} parent=1 // pred_fallthru
      _
    %491 = vsyncpa [#allocation4], 1
    %492 = vsyncpa [#allocation7], 1
    %493 = vsyncpa [#allocation10], 1
    %494 = vsyncpa [#allocation5], 1

</llo_original>
